<compile_context>
chip_gen: v5e
topology: v5e:2x2
jax: 0.10.0
libtpu: 0.0.40
codegen_flags: <defaults>
</compile_context>

<pallas_src>
import jax
import jax.numpy as jnp
from jax.experimental import pallas as pl
from jax.experimental.pallas import tpu as pltpu


# ----------------------------------------------------------------------------
# Ball-query grouping (plain JAX).
# TODO(synk): O(B*N^2) distance matrix + argsort; fine for small N. For real point
#   clouds this (and the neighbor gather below) should move in-kernel via a
#   scalar-prefetched idx table in SMEM + VMEM-resident projected features.
# ----------------------------------------------------------------------------
def ball_query(p, radius, nsample):
    """p: (B,N,3) -> idx (B,N,K) int32, dp (B,N,K,3) relative coords."""
    B, N, _ = p.shape
    dist = jnp.linalg.norm(p[:, :, None, :] - p[:, None, :, :], axis=-1)  # (B,N,N)
    in_ball = dist < radius
    arange = jnp.arange(N)
    # First `nsample` in-ball indices (index order); pad with the first valid
    # neighbor (standard PointNet++ ballquery behavior; self is always in-ball).
    key = jnp.where(in_ball, arange[None, None, :], N)
    idx_sorted = jnp.argsort(key, axis=-1)[..., :nsample]                 # (B,N,K)
    valid = jnp.take_along_axis(key, idx_sorted, axis=-1) < N
    idx = jnp.where(valid, idx_sorted, idx_sorted[..., :1]).astype(jnp.int32)
    grouped_p = jnp.take_along_axis(p[:, None, :, :], idx[..., None], axis=2)
    dp = grouped_p - p[:, :, None, :]                                     # (B,N,K,3)
    return idx, dp


# ----------------------------------------------------------------------------
# Pallas kernel 1: per-point feature projection  g = f @ W_f
# (the feature half of the composed affine, commuted past the neighbor gather).
# ----------------------------------------------------------------------------
def _project_kernel(f_ref, w_ref, o_ref):
    o_ref[...] = jnp.dot(
        f_ref[0], w_ref[...], preferred_element_type=jnp.float32
    )[None].astype(o_ref.dtype)


def project_pallas(f, w_f, *, rt):
    B, N, C = f.shape
    assert N % rt == 0
    return pl.pallas_call(
        _project_kernel,
        out_shape=jax.ShapeDtypeStruct((B, N, C), jnp.float32),
        grid_spec=pltpu.PrefetchScalarGridSpec(
            num_scalar_prefetch=0,
            grid=(B, N // rt),
            in_specs=[pl.BlockSpec((1, rt, C), lambda b, r: (b, r, 0)),
                      pl.BlockSpec(w_f.shape, lambda b, r: (0, 0))],
            out_specs=pl.BlockSpec((1, rt, C), lambda b, r: (b, r, 0)),
        ),
        compiler_params=pltpu.CompilerParams(
            dimension_semantics=("parallel", "parallel")),
    )(f, w_f)


# ----------------------------------------------------------------------------
# Pallas kernel 2 (hot path): per-neighbor affine (dp part) + gathered feature
# part -> max over neighbors -> +bias -> +identity -> ReLU, all in a lane-dense
# packed layout ((pack points) x C = 128 lanes).
# ----------------------------------------------------------------------------
def _resblock_kernel(dp_ref, gg_ref, id_ref, wdp_ref, b_ref, o_ref):
    dp = dp_ref[0]                       # (K, tnp, pack*3)   f32 relative coords
    gg = gg_ref[0]                       # (K, tnp, pack*C)   f32 gathered f @ W_f
    K, tnp, _ = dp.shape
    lanes = gg.shape[-1]

    # dp projection with a block-diagonal kron(I_pack, W_dp): stays in the packed
    # lane-dense layout, so no in-kernel transpose/lane-relayout is needed.
    # (leading-dim-only reshapes: layout-preserving, free.)
    sdp = jnp.dot(dp.reshape(K * tnp, -1), wdp_ref[...],
                  preferred_element_type=jnp.float32).reshape(K, tnp, lanes)

    s = gg + sdp                         # per-neighbor affine (bias deferred past max)
    pooled = jnp.max(s, axis=0)          # reduction='max' over K: leading axis => VPU only
    # bias is constant over neighbors: add it once, after the pool.
    out = jnp.maximum(pooled + b_ref[...] + id_ref[0], 0.0)   # +identity, final ReLU
    o_ref[...] = out[None].astype(o_ref.dtype)


def resblock_pallas(dp_packed, gg_packed, ident_packed, wdp_packed, bias_packed,
                    *, tn, pack, out_dtype=jnp.float32):
    """dp_packed:(B,K,N/pack,pack*3)  gg_packed:(B,K,N/pack,pack*C)
    ident_packed:(B,N/pack,pack*C)  wdp_packed:(pack*3,pack*C)  bias_packed:(1,pack*C)."""
    B, K, NP, dlanes = dp_packed.shape
    lanes = gg_packed.shape[-1]
    tnp = tn // pack
    assert NP % tnp == 0

    flops = 2 * B * K * NP * dlanes * lanes + 4 * B * K * NP * lanes
    bytes_accessed = sum(int(x.size) * x.dtype.itemsize for x in
                         (dp_packed, gg_packed, ident_packed, wdp_packed, bias_packed))
    bytes_accessed += B * NP * lanes * jnp.dtype(out_dtype).itemsize

    return pl.pallas_call(
        _resblock_kernel,
        out_shape=jax.ShapeDtypeStruct((B, NP, lanes), out_dtype),
        grid_spec=pltpu.PrefetchScalarGridSpec(
            num_scalar_prefetch=0,
            grid=(B, NP // tnp),
            in_specs=[
                pl.BlockSpec((1, K, tnp, dlanes), lambda b, n: (b, 0, n, 0)),
                pl.BlockSpec((1, K, tnp, lanes), lambda b, n: (b, 0, n, 0)),
                pl.BlockSpec((1, tnp, lanes), lambda b, n: (b, n, 0)),
                pl.BlockSpec(wdp_packed.shape, lambda b, n: (0, 0)),
                pl.BlockSpec(bias_packed.shape, lambda b, n: (0, 0)),
            ],
            out_specs=pl.BlockSpec((1, tnp, lanes), lambda b, n: (b, n, 0)),
        ),
        compiler_params=pltpu.CompilerParams(
            dimension_semantics=("parallel", "parallel"),
            # Per-step footprint after restructuring is ~1.5 MiB (double-buffered),
            # so the limit is never binding; 48 MiB is safely below physical VMEM on
            # v5e/v6e (128 MiB) and v7x (64 MiB) while leaving room to raise tn.
            vmem_limit_bytes=48 * 1024 * 1024,
        ),
        cost_estimate=pl.CostEstimate(
            flops=flops, transcendentals=0, bytes_accessed=bytes_accessed),
    )(dp_packed, gg_packed, ident_packed, wdp_packed, bias_packed)


# ----------------------------------------------------------------------------
# Parameter init: per-layer conv + eval-mode BN, folded and COMPOSED offline
# into a single (3+C -> C) affine map (f32), then split into dp / feature parts.
# ----------------------------------------------------------------------------
def init_resblock_params(key, in_channels, expansion=1, eps=1e-5):
    C = in_channels
    mid = in_channels * expansion
    channels = [3 + C, C, mid, C]        # CHANNEL_MAP['dp_fj']: channels[0] += 3
    w_fold, b_fold = None, None
    for i in range(len(channels) - 1):
        cin, cout = channels[i], channels[i + 1]
        key, kw, kg, kb = jax.random.split(key, 4)
        # Conv2d(1x1, bias=False) weight (cout, cin) stored transposed as (cin, cout).
        w = jax.random.normal(kw, (cin, cout), jnp.float32) / jnp.sqrt(cin)
        gamma = 1.0 + 0.1 * jax.random.normal(kg, (cout,), jnp.float32)
        beta = 0.1 * jax.random.normal(kb, (cout,), jnp.float32)
        running_mean = jnp.zeros((cout,), jnp.float32)   # eval-mode BN statistics;
        running_var = jnp.ones((cout,), jnp.float32)     # replace with real stats if loading ckpts
        scale = gamma / jnp.sqrt(running_var + eps)
        shift = beta - running_mean * scale
        w_i = w * scale[None, :]                         # BN folded into the weight
        b_i = shift[None, :]                             # (1, cout)
        if w_fold is None:
            w_fold, b_fold = w_i, b_i
        else:                                            # no inner act => affine composition
            w_fold = w_fold @ w_i
            b_fold = b_fold @ w_i + b_i
    w_dp, w_f = w_fold[:3], w_fold[3:]                   # relative-coord / feature halves
    return w_dp, w_f, b_fold


# ----------------------------------------------------------------------------
# Forward wrapper: ResBlock.forward([p, f]) -> [p, f_out]
# ----------------------------------------------------------------------------
def resblock_forward(p, f, params, *, radius, nsample, tn):
    B, N, C = f.shape
    w_dp, w_f, bias = params
    pack = 128 // C if (C <= 128 and 128 % C == 0) else 1   # points per 128-lane row
    assert N % tn == 0 and tn % pack == 0

    idx, dp = ball_query(p, radius, nsample)                # (B,N,K), (B,N,K,3)

    # Commute the feature projection past the gather: once per point, not per neighbor.
    g = project_pallas(f, w_f, rt=min(tn, N))               # (B,N,C) f32

    # Gather pre-projected features; K-major so the in-kernel pool is a leading-axis
    # reduce.  TODO(synk): this gather still materializes a K-expanded (B,K,N,C)
    # tensor in HBM; moving it in-kernel (idx via scalar prefetch + VMEM-resident g)
    # removes that read entirely.
    idx_km = jnp.transpose(idx, (0, 2, 1))                  # (B,K,N)
    gg = jnp.take_along_axis(g[:, None], idx_km[..., None], axis=2)   # (B,K,N,C)
    dp_km = jnp.transpose(dp, (0, 2, 1, 3))                 # (B,K,N,3)

    # Lane-dense packing (`pack` consecutive points share one 128-wide row);
    # all of these are layout-preserving (free) reshapes.
    gg_packed = gg.reshape(B, nsample, N // pack, pack * C)
    dp_packed = dp_km.reshape(B, nsample, N // pack, pack * 3)
    ident_packed = f.reshape(B, N // pack, pack * C)
    wdp_packed = jnp.kron(jnp.eye(pack, dtype=jnp.float32), w_dp)     # block-diagonal
    bias_packed = jnp.tile(bias, (1, pack))

    out_packed = resblock_pallas(dp_packed, gg_packed, ident_packed,
                                 wdp_packed, bias_packed, tn=tn, pack=pack)
    return p, out_packed.reshape(B, N, C)


if __name__ == "__main__":
    # Small but tile-friendly shapes consistent with the module.
    B, N, C_in = 2, 512, 32
    expansion = 4                        # LocalAggregation channels [35, 32, 128, 32]
    radius, nsample = 0.2, 16            # ballquery group_args
    tn = 256                             # point tile: grid (B, N//tn) = (2, 2) -> 4 steps
                                         # (2 per TensorCore on v7x megacore)

    key = jax.random.PRNGKey(0)
    kp, kf, kparam = jax.random.split(key, 3)
    p = jax.random.uniform(kp, (B, N, 3), jnp.float32)       # point coords in unit cube
    f = jax.random.normal(kf, (B, N, C_in), jnp.float32)     # point features

    params = init_resblock_params(kparam, C_in, expansion=expansion)

    p_out, f_out = resblock_forward(p, f, params, radius=radius,
                                    nsample=nsample, tn=tn)
    f_out = jax.block_until_ready(f_out)
    assert f_out.shape == (B, N, C_in), f_out.shape
    print("KERNEL_OK")
</pallas_src>

<mosaic_0001>
module attributes {stable_mosaic.version = 11 : i64} {
  func.func @_project_kernel(%arg0: i32, %arg1: i32, %arg2: memref<1x256x32xf32, #tpu.memory_space<vmem>>, %arg3: memref<32x32xf32, #tpu.memory_space<vmem>>, %arg4: memref<1x256x32xf32, #tpu.memory_space<vmem>>) attributes {dimension_semantics = [#tpu.dimension_semantics<parallel>, #tpu.dimension_semantics<parallel>], iteration_bounds = array<i64: 2, 2>, scalar_prefetch = 0 : i64, scratch_operands = 0 : i64, tpu.core_type = #tpu.core_type<tc>, window_params = [{transform_indices = @transform_0, window_bounds = array<i64: 1, 256, 32>}, {pipeline_mode = #tpu.pipeline_mode<synchronous>, transform_indices = @transform_1, window_bounds = array<i64: 32, 32>}, {transform_indices = @transform_2, window_bounds = array<i64: 1, 256, 32>}]} {
    %c0 = arith.constant 0 : index
    %c0_0 = arith.constant 0 : index
    %c0_1 = arith.constant 0 : index
    %0 = vector.load %arg2[%c0, %c0_0, %c0_1] : memref<1x256x32xf32, #tpu.memory_space<vmem>>, vector<1x256x32xf32>
    %1 = vector.shape_cast %0 : vector<1x256x32xf32> to vector<256x32xf32>
    %c0_2 = arith.constant 0 : index
    %c0_3 = arith.constant 0 : index
    %2 = vector.load %arg3[%c0_2, %c0_3] : memref<32x32xf32, #tpu.memory_space<vmem>>, vector<32x32xf32>
    %cst = arith.constant dense<0.000000e+00> : vector<256x32xf32>
    %3 = tpu.matmul %1, %2, %cst {dimension_numbers = #tpu.dot_dimension_numbers<[1], [0], [0], [1], [0, 0, 1, 1], [], []>} : vector<256x32xf32>, vector<32x32xf32>, vector<256x32xf32> -> vector<256x32xf32>
    %4 = vector.shape_cast %3 : vector<256x32xf32> to vector<1x256x32xf32>
    %c0_4 = arith.constant 0 : index
    %c0_5 = arith.constant 0 : index
    %c0_6 = arith.constant 0 : index
    %5 = vector.load %arg4[%c0_4, %c0_5, %c0_6] : memref<1x256x32xf32, #tpu.memory_space<vmem>>, vector<1x256x32xf32>
    tpu.vector_store %arg4[%c0_4, %c0_5, %c0_6], %4 {strides = array<i32>} : memref<1x256x32xf32, #tpu.memory_space<vmem>>, vector<1x256x32xf32>,
    return
  }
  func.func @transform_0(%arg0: i32, %arg1: i32) -> (i32, i32, i32) {
    %c0_i32 = arith.constant 0 : i32
    %c0_i32_0 = arith.constant 0 : i32
    return %arg0, %arg1, %c0_i32 : i32, i32, i32
  }
  func.func @transform_1(%arg0: i32, %arg1: i32) -> (i32, i32) {
    %c0_i32 = arith.constant 0 : i32
    %c0_i32_0 = arith.constant 0 : i32
    %c0_i32_1 = arith.constant 0 : i32
    return %c0_i32, %c0_i32_0 : i32, i32
  }
  func.func @transform_2(%arg0: i32, %arg1: i32) -> (i32, i32, i32) {
    %c0_i32 = arith.constant 0 : i32
    %c0_i32_0 = arith.constant 0 : i32
    return %arg0, %arg1, %c0_i32 : i32, i32, i32
  }
}

</mosaic_0001>

<llo_original>
// kernel: tpu_custom_call.1
$region0: #{tpu_custom_call.1}
  #allocation0 [shape = 'u32[]', space=smem, size = 0x4, offset = 0x4, fixed_abs, tag = 'smem constant byte address 0x4 - core index']
  #allocation1 [shape = 'u32[72,128]{1,0:T(1,128)}', space=vmem, size = 0x9000, scoped, tag = 'internal scratch']
  %s0 = inlined_call_operand.vmem [shape: f32[2,512,32], index: 0, kind: input, shape index: {}]
  %s1 = inlined_call_operand.vmem [shape: f32[32,32], index: 1, kind: input, shape index: {}]
  %s2 = inlined_call_operand.vmem [shape: f32[2,512,32], index: 2, kind: output, shape index: {}]
  %s3 = sld [smem:[#allocation0]]
  $region41: #{tpu_custom_call.1} parent=0
    _
  %s5 = ssub.s32 1, %s3
  %s6 = scalar_select 0, %s5, %s3
  loop: start=0, step=1, limit=6
  $region2: #{tpu_custom_call.1} parent=0 // loop_pre_header
    _
  $region3: #{tpu_custom_call.1} parent=0 // loop_header
    %s8 = sphi 0, %s12
    %p9 = scmp.ge.s32.totalorder %s8, 6
    %s15 = sphi 0, %s27
    %s16 = sphi 0, %s23
    %s17 = sphi 0, %s15
    %s18 = sphi 0, %s16
    %s19 = sphi 0, %s17
    %s20 = sphi 0, %s18
    %s32 = sphi 0, %s34
    %s35 = sphi 0, %s32
    %s36 = sphi 0, %s35
    %s52 = sphi 0, %s36
    %s56 = sphi 0, %s56
    %s58 = sphi 0, %s56
    %s59 = sphi 0, %s58
    %s73 = sphi 0, %s59
    %s81 = sphi 0, %s83
    %s84 = sphi 0, %s81
    %s85 = sphi 0, %s84
    %s101 = sphi 0, %s85
  $region4: #{tpu_custom_call.1} parent=0 // loop_header_branch
    %11 = sbr.rel (%p9) target = $region8
  $region5: #{tpu_custom_call.1} parent=0 // loop_body
    %s13 = ssub.s32 %s8, 1
    %s14 = ssub.s32 %s8, 2
    %s21 = sadd.s32 1, %s16
    %p22 = scmp.ge.s32.totalorder %s21, 2
    %s23 = scalar_select %p22, 0, %s21
    %s24 = sadd.s32 1, %s15
    %s25 = scalar_select %p22, %s24, %s15
    %p26 = scmp.ge.s32.totalorder %s25, 2
    %s27 = scalar_select %p26, 0, %s25
    %s28 = ssub.s32 %s15, %s27
    %s29 = ssub.s32 %s16, %s23
    %s30 = sor.u32 %s28, %s29
    %p31 = scmp.eq.s32.totalorder %s30, 0
    %s33 = sadd.s32 %s32, 1
    %s34 = scalar_select %p31, %s32, %s33
    %p37 = pneg %p31
    %p38 = scmp.eq.s32.totalorder %s8, 3
    %p39 = por %p37, %p38
    %p40 = scmp.ne.s32.totalorder %s32, %s35
    %p41 = scmp.eq.s32.totalorder %s8, 0
    %p42 = por %p40, %p41
    %p43 = scmp.ne.s32.totalorder %s32, %s35
    %p44 = scmp.eq.s32.totalorder %s13, 3
    %p45 = por %p43, %p44
    %p46 = scmp.ne.s32.totalorder %s35, %s36
    %p47 = scmp.eq.s32.totalorder %s13, 0
    %p48 = por %p46, %p47
    %p49 = scmp.ne.s32.totalorder %s35, %s36
    %p50 = scmp.eq.s32.totalorder %s14, 3
    %p51 = por %p49, %p50
    %p53 = scmp.ne.s32.totalorder %s36, %s52
    %p54 = scmp.eq.s32.totalorder %s14, 0
    %p55 = por %p53, %p54
    %s57 = sadd.s32 %s56, 1
    %p60 = scmp.eq.s32.totalorder %s8, 3
    %p61 = scmp.ne.s32.totalorder %s56, %s58
    %p62 = scmp.eq.s32.totalorder %s8, 0
    %p63 = por %p61, %p62
    %p64 = scmp.ne.s32.totalorder %s56, %s58
    %p65 = scmp.eq.s32.totalorder %s13, 3
    %p66 = por %p64, %p65
    %p67 = scmp.ne.s32.totalorder %s58, %s59
    %p68 = scmp.eq.s32.totalorder %s13, 0
    %p69 = por %p67, %p68
    %p70 = scmp.ne.s32.totalorder %s58, %s59
    %p71 = scmp.eq.s32.totalorder %s14, 3
    %p72 = por %p70, %p71
    %p74 = scmp.ne.s32.totalorder %s59, %s73
    %p75 = scmp.eq.s32.totalorder %s14, 0
    %p76 = por %p74, %p75
    %s77 = ssub.s32 %s15, %s27
    %s78 = ssub.s32 %s16, %s23
    %s79 = sor.u32 %s77, %s78
    %p80 = scmp.eq.s32.totalorder %s79, 0
    %s82 = sadd.s32 %s81, 1
    %s83 = scalar_select %p80, %s81, %s82
    %p86 = pneg %p80
    %p87 = scmp.eq.s32.totalorder %s8, 3
    %p88 = por %p86, %p87
    %p89 = scmp.ne.s32.totalorder %s81, %s84
    %p90 = scmp.eq.s32.totalorder %s8, 0
    %p91 = por %p89, %p90
    %p92 = scmp.ne.s32.totalorder %s81, %s84
    %p93 = scmp.eq.s32.totalorder %s13, 3
    %p94 = por %p92, %p93
    %p95 = scmp.ne.s32.totalorder %s84, %s85
    %p96 = scmp.eq.s32.totalorder %s13, 0
    %p97 = por %p95, %p96
    %p98 = scmp.ne.s32.totalorder %s84, %s85
    %p99 = scmp.eq.s32.totalorder %s14, 3
    %p100 = por %p98, %p99
    %p102 = scmp.ne.s32.totalorder %s85, %s101
    %p103 = scmp.eq.s32.totalorder %s14, 0
    %p104 = por %p102, %p103
    %p105 = scmp.le.s32.totalorder 1, %s8
    %p106 = scmp.lt.s32.totalorder %s8, 5
    %p107 = pnand %p105, %p106
    %p108 = pneg %p107
    // Predicated region
    $region9: #{tpu_custom_call.1} parent=5 // pred_check
      _
    $region10: #{tpu_custom_call.1} parent=5 // pred_check_branch
      %110 = sbr.rel (%p107) target = $region12
    $region11: #{tpu_custom_call.1} parent=5 // pred_region
      %s111 = ssub.s32 %s8, 1
      // Predicated region
      $region13: #{tpu_custom_call.1} parent=11 // pred_check
        %p112 = pneg %p69
      $region14: #{tpu_custom_call.1} parent=11 // pred_check_branch
        %114 = sbr.rel (%p112) target = $region16
      $region15: #{tpu_custom_call.1} parent=11 // pred_region
        _
      $region16: #{tpu_custom_call.1} parent=11 // pred_fallthru
        _
    $region12: #{tpu_custom_call.1} parent=5 // pred_fallthru
      _
    %p115 = scmp.lt.s32.totalorder %s8, 4
    // Predicated region
    $region17: #{tpu_custom_call.1} parent=5 // pred_check
      %p116 = pneg %p115
    $region18: #{tpu_custom_call.1} parent=5 // pred_check_branch
      %118 = sbr.rel (%p116) target = $region20
    $region19: #{tpu_custom_call.1} parent=5 // pred_region
      // Predicated region
      $region21: #{tpu_custom_call.1} parent=19 // pred_check
        %p119 = pneg %p42
      $region22: #{tpu_custom_call.1} parent=19 // pred_check_branch
        %121 = sbr.rel (%p119) target = $region24
      $region23: #{tpu_custom_call.1} parent=19 // pred_region
        %s122 = smul.u32 32, %s16
        %p123 = scmp.lt.s32.totalorder %s15, 1
        %s124 = scalar_select %p123, %s15, 1
        %p125 = scmp.lt.s32.totalorder %s122, 63
        %s126 = scalar_select %p125, %s122, 63
        %s127 = smul.addr %s124, 64
        %s128 = sadd.s32 %s126, %s127
        %s129 = smul.addr %s128, 8
        %s130 = scalar_lea.vmem %s0, %s129
        %s131 = smul.u32 32, %s16
      $region24: #{tpu_custom_call.1} parent=19 // pred_fallthru
        _
    $region20: #{tpu_custom_call.1} parent=5 // pred_fallthru
      _
    %p132 = scmp.le.s32.totalorder 1, %s8
    %p133 = scmp.lt.s32.totalorder %s8, 5
    %p134 = pnand %p132, %p133
    %p135 = pneg %p134
    // Predicated region
    $region25: #{tpu_custom_call.1} parent=5 // pred_check
      _
    $region26: #{tpu_custom_call.1} parent=5 // pred_check_branch
      %137 = sbr.rel (%p134) target = $region28
    $region27: #{tpu_custom_call.1} parent=5 // pred_region
      %s138 = ssub.s32 %s8, 1
      %s139 = smul.u32 32, %s18
      %p140 = scmp.lt.s32.totalorder %s17, 1
      %s141 = scalar_select %p140, %s17, 1
      %p142 = scmp.lt.s32.totalorder %s139, 63
      %s143 = scalar_select %p142, %s139, 63
      %s144 = smul.addr %s141, 64
      %s145 = sadd.s32 %s143, %s144
      %s146 = smul.addr %s145, 8
      %s147 = scalar_lea.vmem %s0, %s146
      %p148 = pneg %p48
      %p149 = pneg %p45
      %p150 = pneg %p69
      %p151 = pneg %p66
      %p152 = pneg %p97
      %p153 = pneg %p94
      %s154 = smul.u32 32, %s18
      %p155 = scmp.lt.s32.totalorder %s17, 1
      %s156 = scalar_select %p155, %s17, 1
      %p157 = scmp.lt.s32.totalorder %s154, 63
      %s158 = scalar_select %p157, %s154, 63
      %s159 = smul.addr %s156, 64
      %s160 = sadd.s32 %s158, %s159
      %s161 = smul.addr %s160, 8
      %s162 = scalar_lea.vmem %s2, %s161
      %s163 = smul.u32 32, %s18
      %p164 = scmp.lt.s32.totalorder %s17, 1
      %s165 = scalar_select %p164, %s17, 1
      %p166 = scmp.lt.s32.totalorder %s163, 63
      %s167 = scalar_select %p166, %s163, 63
      %s168 = smul.addr %s165, 64
      %s169 = sadd.s32 %s167, %s168
      %s170 = smul.addr %s169, 8
      %s171 = scalar_lea.vmem %s0, %s170
      %s172 = smul.u32 32, %s18
      %s173 = smul.u32 32, %s18
      %p174 = scmp.lt.s32.totalorder %s17, 1
      %s175 = scalar_select %p174, %s17, 1
      %p176 = scmp.lt.s32.totalorder %s173, 63
      %s177 = scalar_select %p176, %s173, 63
      %s178 = smul.addr %s175, 64
      %s179 = sadd.s32 %s177, %s178
      %s180 = smul.addr %s179, 8
      %s181 = scalar_lea.vmem %s2, %s180
      %s182 = smul.u32 32, %s18
      %v183 = vld [vmem:[%s171] sm:$0xff]
      %v184 = vld [vmem:[%s171 + $0x8] sm:$0xff]
      %v185 = vld [vmem:[%s171 + $0x10] sm:$0xff]
      %v186 = vld [vmem:[%s171 + $0x18] sm:$0xff]
      %v187 = vld [vmem:[%s171 + $0x20] sm:$0xff]
      %v188 = vld [vmem:[%s171 + $0x28] sm:$0xff]
      %v189 = vld [vmem:[%s171 + $0x30] sm:$0xff]
      %v190 = vld [vmem:[%s171 + $0x38] sm:$0xff]
      %v191 = vld [vmem:[%s171 + $0x40] sm:$0xff]
      %v192 = vld [vmem:[%s171 + $0x48] sm:$0xff]
      %v193 = vld [vmem:[%s171 + $0x50] sm:$0xff]
      %v194 = vld [vmem:[%s171 + $0x58] sm:$0xff]
      %v195 = vld [vmem:[%s171 + $0x60] sm:$0xff]
      %v196 = vld [vmem:[%s171 + $0x68] sm:$0xff]
      %v197 = vld [vmem:[%s171 + $0x70] sm:$0xff]
      %v198 = vld [vmem:[%s171 + $0x78] sm:$0xff]
      %v199 = vld [vmem:[%s171 + $0x80] sm:$0xff]
      %v200 = vld [vmem:[%s171 + $0x88] sm:$0xff]
      %v201 = vld [vmem:[%s171 + $0x90] sm:$0xff]
      %v202 = vld [vmem:[%s171 + $0x98] sm:$0xff]
      %v203 = vld [vmem:[%s171 + $0xa0] sm:$0xff]
      %v204 = vld [vmem:[%s171 + $0xa8] sm:$0xff]
      %v205 = vld [vmem:[%s171 + $0xb0] sm:$0xff]
      %v206 = vld [vmem:[%s171 + $0xb8] sm:$0xff]
      %v207 = vld [vmem:[%s171 + $0xc0] sm:$0xff]
      %v208 = vld [vmem:[%s171 + $0xc8] sm:$0xff]
      %v209 = vld [vmem:[%s171 + $0xd0] sm:$0xff]
      %v210 = vld [vmem:[%s171 + $0xd8] sm:$0xff]
      %v211 = vld [vmem:[%s171 + $0xe0] sm:$0xff]
      %v212 = vld [vmem:[%s171 + $0xe8] sm:$0xff]
      %v213 = vld [vmem:[%s171 + $0xf0] sm:$0xff]
      %v214 = vld [vmem:[%s171 + $0xf8] sm:$0xff]
      %v215 = vld [vmem:[%s1] sm:$0xff]
      %v216 = vld [vmem:[%s1 + $0x8] sm:$0xff]
      %v217 = vld [vmem:[%s1 + $0x10] sm:$0xff]
      %v218 = vld [vmem:[%s1 + $0x18] sm:$0xff]
      %vm219 = vcmask 261120
      %v221 = vsel %vm219, %v183, 0
      %v224 = vsel %vm219, %v184, 0
      %v227 = vsel %vm219, %v185, 0
      %v230 = vsel %vm219, %v186, 0
      %v233 = vsel %vm219, %v187, 0
      %v236 = vsel %vm219, %v188, 0
      %v239 = vsel %vm219, %v189, 0
      %v242 = vsel %vm219, %v190, 0
      %v245 = vsel %vm219, %v191, 0
      %v248 = vsel %vm219, %v192, 0
      %v251 = vsel %vm219, %v193, 0
      %v254 = vsel %vm219, %v194, 0
      %v257 = vsel %vm219, %v195, 0
      %v260 = vsel %vm219, %v196, 0
      %v263 = vsel %vm219, %v197, 0
      %v266 = vsel %vm219, %v198, 0
      %v269 = vsel %vm219, %v199, 0
      %v272 = vsel %vm219, %v200, 0
      %v275 = vsel %vm219, %v201, 0
      %v278 = vsel %vm219, %v202, 0
      %v281 = vsel %vm219, %v203, 0
      %v284 = vsel %vm219, %v204, 0
      %v287 = vsel %vm219, %v205, 0
      %v290 = vsel %vm219, %v206, 0
      %v293 = vsel %vm219, %v207, 0
      %v296 = vsel %vm219, %v208, 0
      %v299 = vsel %vm219, %v209, 0
      %v302 = vsel %vm219, %v210, 0
      %v305 = vsel %vm219, %v211, 0
      %v308 = vsel %vm219, %v212, 0
      %v311 = vsel %vm219, %v213, 0
      %v314 = vsel %vm219, %v214, 0
      %316 = vmatpush.msra.mxu0 0.0
      %317 = vmatpush.msra.mxu0 0.0
      %318 = vmatpush.msra.mxu0 0.0
      %319 = vmatpush.msra.mxu0 0.0
      %320 = vmatpush.msra.mxu0 0.0
      %321 = vmatpush.msra.mxu0 0.0
      %322 = vmatpush.msra.mxu0 0.0
      %323 = vmatpush.msra.mxu0 0.0
      %324 = vmatpush.msra.mxu0 0.0
      %325 = vmatpush.msra.mxu0 0.0
      %326 = vmatpush.msra.mxu0 0.0
      %327 = vmatpush.msra.mxu0 0.0
      %328 = vmatpush.msra.mxu0 %v218
      %329 = vmatpush.msra.mxu0 %v217
      %330 = vmatpush.msra.mxu0 %v216
      %331 = vmatpush.msra.mxu0 %v215
      %332 = vmatmul.f32.gmra.mxu0 %v221
      %v333 = vpop.f32.mrf.mxu0
      %v334 = vadd.f32 0.0, %v333
      %335 = vmatmul.f32.gmra.mxu0 %v224
      %v336 = vpop.f32.mrf.mxu0
      %v337 = vadd.f32 0.0, %v336
      %338 = vmatmul.f32.gmra.mxu0 %v227
      %v339 = vpop.f32.mrf.mxu0
      %v340 = vadd.f32 0.0, %v339
      %341 = vmatmul.f32.gmra.mxu0 %v230
      %v342 = vpop.f32.mrf.mxu0
      %v343 = vadd.f32 0.0, %v342
      %344 = vmatmul.f32.gmra.mxu0 %v233
      %v345 = vpop.f32.mrf.mxu0
      %v346 = vadd.f32 0.0, %v345
      %347 = vmatmul.f32.gmra.mxu0 %v236
      %v348 = vpop.f32.mrf.mxu0
      %v349 = vadd.f32 0.0, %v348
      %350 = vmatmul.f32.gmra.mxu0 %v239
      %v351 = vpop.f32.mrf.mxu0
      %v352 = vadd.f32 0.0, %v351
      %353 = vmatmul.f32.gmra.mxu0 %v242
      %v354 = vpop.f32.mrf.mxu0
      %v355 = vadd.f32 0.0, %v354
      %356 = vmatmul.f32.gmra.mxu0 %v245
      %v357 = vpop.f32.mrf.mxu0
      %v358 = vadd.f32 0.0, %v357
      %359 = vmatmul.f32.gmra.mxu0 %v248
      %v360 = vpop.f32.mrf.mxu0
      %v361 = vadd.f32 0.0, %v360
      %362 = vmatmul.f32.gmra.mxu0 %v251
      %v363 = vpop.f32.mrf.mxu0
      %v364 = vadd.f32 0.0, %v363
      %365 = vmatmul.f32.gmra.mxu0 %v254
      %v366 = vpop.f32.mrf.mxu0
      %v367 = vadd.f32 0.0, %v366
      %368 = vmatmul.f32.gmra.mxu0 %v257
      %v369 = vpop.f32.mrf.mxu0
      %v370 = vadd.f32 0.0, %v369
      %371 = vmatmul.f32.gmra.mxu0 %v260
      %v372 = vpop.f32.mrf.mxu0
      %v373 = vadd.f32 0.0, %v372
      %374 = vmatmul.f32.gmra.mxu0 %v263
      %v375 = vpop.f32.mrf.mxu0
      %v376 = vadd.f32 0.0, %v375
      %377 = vmatmul.f32.gmra.mxu0 %v266
      %v378 = vpop.f32.mrf.mxu0
      %v379 = vadd.f32 0.0, %v378
      %380 = vmatmul.f32.gmra.mxu0 %v269
      %v381 = vpop.f32.mrf.mxu0
      %v382 = vadd.f32 0.0, %v381
      %383 = vmatmul.f32.gmra.mxu0 %v272
      %v384 = vpop.f32.mrf.mxu0
      %v385 = vadd.f32 0.0, %v384
      %386 = vmatmul.f32.gmra.mxu0 %v275
      %v387 = vpop.f32.mrf.mxu0
      %v388 = vadd.f32 0.0, %v387
      %389 = vmatmul.f32.gmra.mxu0 %v278
      %v390 = vpop.f32.mrf.mxu0
      %v391 = vadd.f32 0.0, %v390
      %392 = vmatmul.f32.gmra.mxu0 %v281
      %v393 = vpop.f32.mrf.mxu0
      %v394 = vadd.f32 0.0, %v393
      %395 = vmatmul.f32.gmra.mxu0 %v284
      %v396 = vpop.f32.mrf.mxu0
      %v397 = vadd.f32 0.0, %v396
      %398 = vmatmul.f32.gmra.mxu0 %v287
      %v399 = vpop.f32.mrf.mxu0
      %v400 = vadd.f32 0.0, %v399
      %401 = vmatmul.f32.gmra.mxu0 %v290
      %v402 = vpop.f32.mrf.mxu0
      %v403 = vadd.f32 0.0, %v402
      %404 = vmatmul.f32.gmra.mxu0 %v293
      %v405 = vpop.f32.mrf.mxu0
      %v406 = vadd.f32 0.0, %v405
      %407 = vmatmul.f32.gmra.mxu0 %v296
      %v408 = vpop.f32.mrf.mxu0
      %v409 = vadd.f32 0.0, %v408
      %410 = vmatmul.f32.gmra.mxu0 %v299
      %v411 = vpop.f32.mrf.mxu0
      %v412 = vadd.f32 0.0, %v411
      %413 = vmatmul.f32.gmra.mxu0 %v302
      %v414 = vpop.f32.mrf.mxu0
      %v415 = vadd.f32 0.0, %v414
      %416 = vmatmul.f32.gmra.mxu0 %v305
      %v417 = vpop.f32.mrf.mxu0
      %v418 = vadd.f32 0.0, %v417
      %419 = vmatmul.f32.gmra.mxu0 %v308
      %v420 = vpop.f32.mrf.mxu0
      %v421 = vadd.f32 0.0, %v420
      %422 = vmatmul.f32.gmra.mxu0 %v311
      %v423 = vpop.f32.mrf.mxu0
      %v424 = vadd.f32 0.0, %v423
      %425 = vmatmul.f32.gmra.mxu0 %v314
      %v426 = vpop.f32.mrf.mxu0
      %v427 = vadd.f32 0.0, %v426
      %428 = vdwg.mxu0
      %429 = vst.msk [vmem:[%s181] sm:$0xff] %vm219, %v334
      %430 = vst.msk [vmem:[%s181 + $0x8] sm:$0xff] %vm219, %v337
      %431 = vst.msk [vmem:[%s181 + $0x10] sm:$0xff] %vm219, %v340
      %432 = vst.msk [vmem:[%s181 + $0x18] sm:$0xff] %vm219, %v343
      %433 = vst.msk [vmem:[%s181 + $0x20] sm:$0xff] %vm219, %v346
      %434 = vst.msk [vmem:[%s181 + $0x28] sm:$0xff] %vm219, %v349
      %435 = vst.msk [vmem:[%s181 + $0x30] sm:$0xff] %vm219, %v352
      %436 = vst.msk [vmem:[%s181 + $0x38] sm:$0xff] %vm219, %v355
      %437 = vst.msk [vmem:[%s181 + $0x40] sm:$0xff] %vm219, %v358
      %438 = vst.msk [vmem:[%s181 + $0x48] sm:$0xff] %vm219, %v361
      %439 = vst.msk [vmem:[%s181 + $0x50] sm:$0xff] %vm219, %v364
      %440 = vst.msk [vmem:[%s181 + $0x58] sm:$0xff] %vm219, %v367
      %441 = vst.msk [vmem:[%s181 + $0x60] sm:$0xff] %vm219, %v370
      %442 = vst.msk [vmem:[%s181 + $0x68] sm:$0xff] %vm219, %v373
      %443 = vst.msk [vmem:[%s181 + $0x70] sm:$0xff] %vm219, %v376
      %444 = vst.msk [vmem:[%s181 + $0x78] sm:$0xff] %vm219, %v379
      %445 = vst.msk [vmem:[%s181 + $0x80] sm:$0xff] %vm219, %v382
      %446 = vst.msk [vmem:[%s181 + $0x88] sm:$0xff] %vm219, %v385
      %447 = vst.msk [vmem:[%s181 + $0x90] sm:$0xff] %vm219, %v388
      %448 = vst.msk [vmem:[%s181 + $0x98] sm:$0xff] %vm219, %v391
      %449 = vst.msk [vmem:[%s181 + $0xa0] sm:$0xff] %vm219, %v394
      %450 = vst.msk [vmem:[%s181 + $0xa8] sm:$0xff] %vm219, %v397
      %451 = vst.msk [vmem:[%s181 + $0xb0] sm:$0xff] %vm219, %v400
      %452 = vst.msk [vmem:[%s181 + $0xb8] sm:$0xff] %vm219, %v403
      %453 = vst.msk [vmem:[%s181 + $0xc0] sm:$0xff] %vm219, %v406
      %454 = vst.msk [vmem:[%s181 + $0xc8] sm:$0xff] %vm219, %v409
      %455 = vst.msk [vmem:[%s181 + $0xd0] sm:$0xff] %vm219, %v412
      %456 = vst.msk [vmem:[%s181 + $0xd8] sm:$0xff] %vm219, %v415
      %457 = vst.msk [vmem:[%s181 + $0xe0] sm:$0xff] %vm219, %v418
      %458 = vst.msk [vmem:[%s181 + $0xe8] sm:$0xff] %vm219, %v421
      %459 = vst.msk [vmem:[%s181 + $0xf0] sm:$0xff] %vm219, %v424
      %460 = vst.msk [vmem:[%s181 + $0xf8] sm:$0xff] %vm219, %v427
      %s461 = smul.u32 32, %s18
      %p462 = scmp.lt.s32.totalorder %s17, 1
      %s463 = scalar_select %p462, %s17, 1
      %p464 = scmp.lt.s32.totalorder %s461, 63
      %s465 = scalar_select %p464, %s461, 63
      %s466 = smul.addr %s463, 64
      %s467 = sadd.s32 %s465, %s466
      %s468 = smul.addr %s467, 8
      %s469 = scalar_lea.vmem %s2, %s468
      // Predicated region
      $region29: #{tpu_custom_call.1} parent=27 // pred_check
        %p470 = pneg %p94
      $region30: #{tpu_custom_call.1} parent=27 // pred_check_branch
        %472 = sbr.rel (%p470) target = $region32
      $region31: #{tpu_custom_call.1} parent=27 // pred_region
        %s473 = smul.u32 32, %s18
      $region32: #{tpu_custom_call.1} parent=27 // pred_fallthru
        _
    $region28: #{tpu_custom_call.1} parent=5 // pred_fallthru
      _
    %p474 = scmp.le.s32.totalorder 2, %s8
    // Predicated region
    $region33: #{tpu_custom_call.1} parent=5 // pred_check
      %p475 = pneg %p474
    $region34: #{tpu_custom_call.1} parent=5 // pred_check_branch
      %477 = sbr.rel (%p475) target = $region36
    $region35: #{tpu_custom_call.1} parent=5 // pred_region
      %s478 = ssub.s32 %s8, 2
      // Predicated region
      $region37: #{tpu_custom_call.1} parent=35 // pred_check
        %p479 = pneg %p100
      $region38: #{tpu_custom_call.1} parent=35 // pred_check_branch
        %481 = sbr.rel (%p479) target = $region40
      $region39: #{tpu_custom_call.1} parent=35 // pred_region
        %s482 = smul.u32 32, %s20
        %p483 = scmp.lt.s32.totalorder %s19, 1
        %s484 = scalar_select %p483, %s19, 1
        %p485 = scmp.lt.s32.totalorder %s482, 63
        %s486 = scalar_select %p485, %s482, 63
        %s487 = smul.addr %s484, 64
        %s488 = sadd.s32 %s486, %s487
        %s489 = smul.addr %s488, 8
        %s490 = scalar_lea.vmem %s2, %s489
      $region40: #{tpu_custom_call.1} parent=35 // pred_fallthru
        _
    $region36: #{tpu_custom_call.1} parent=5 // pred_fallthru
      _
  $region6: #{tpu_custom_call.1} parent=0 // loop_footer
    %s12 = sadd.s32 1, %s8
  $region7: #{tpu_custom_call.1} parent=0 // loop_footer_branch
    %7 = sbr.rel target = $region3
  $region8: #{tpu_custom_call.1} parent=0 // loop_exit
    _

</llo_original>
